<compile_context>
chip_gen: v7x
topology: tpu7x:2x2x1
jax: 0.10.0
libtpu: 0.0.40
codegen_flags: <defaults>
</compile_context>

<pallas_src>
from typing import NamedTuple, Optional

import numpy as np
import jax
import jax.numpy as jnp
from jax import lax
from jax.experimental import pallas as pl
from jax.experimental.pallas import tpu as pltpu


# ----------------------------------------------------------------------------
# helpers
# ----------------------------------------------------------------------------
def _round_up(x: int, m: int) -> int:
    return ((x + m - 1) // m) * m


def _pick_tile(n: int, target: int):
    """Tile size and zero-padded extent for one tiled axis."""
    if n <= target:
        return n, n                      # full-extent block (no (8,128) issue)
    return target, _round_up(n, target)


def _vmem_limit(footprint_bytes: int) -> int:
    """vmem_limit_bytes from the actual tile footprint (+headroom), capped at
    the physical per-core VMEM (64 MiB on v7x, 128 MiB on v5e/v6e)."""
    try:
        cap = int(pltpu.get_tpu_info().vmem_capacity_bytes)
    except Exception:
        cap = 64 * 1024 * 1024           # v7x per-TC capacity == safe everywhere
    want = int(footprint_bytes * 1.5) + 4 * 1024 * 1024
    return max(16 * 1024 * 1024, min(want, cap))


# ----------------------------------------------------------------------------
# graph-constant prologue (hoisted & cached per graph, reused across layers)
# ----------------------------------------------------------------------------
class GraphCache(NamedTuple):
    n_dst: int
    n_src: int
    tm: int
    tk: int
    n_dst_p: int
    n_src_p: int
    use_pallas: bool
    adj: jax.Array                        # f32 adjacency (XLA fallback path)
    adj_q: Optional[jax.Array]            # int8 0/1 adjacency, zero padded
    src_norm: jax.Array                   # (n_src, 1) f32, out-deg^-0.5
    src_norm_p: Optional[jax.Array]       # (n_src_p, 1) f32 (pad value 1.0)
    dst_norm_p: Optional[jax.Array]       # (n_dst_p, 1) f32 (pad value 1.0)


def prepare_graph(adj, *, tm_target: int = 1024, tk_target: int = 512) -> GraphCache:
    """Precompute graph-constant data (degree norms, quantized/padded adjacency,
    tiling) ONCE; reuse it across GraphConv layers / cache-reuse steps instead of
    re-reading the O(N^2) adjacency several times per forward call."""
    adj = jnp.asarray(adj)
    n_dst, n_src = adj.shape
    adj_f32 = adj.astype(jnp.float32)

    # norm='both': src out-degree^-0.5 and dst in-degree^-0.5, clamp(min=1)
    src_norm = lax.rsqrt(jnp.maximum(jnp.sum(adj_f32, axis=0), 1.0)).reshape(n_src, 1)
    dst_norm = lax.rsqrt(jnp.maximum(jnp.sum(adj_f32, axis=1), 1.0)).reshape(n_dst, 1)

    # cap tm so there are >= 2 dst tiles -> the "parallel" dst axis can feed
    # both TensorCores on v7x (moot on single-TC v5e/v6e).
    tm_goal = tm_target
    if n_dst > 2 * 128:
        tm_goal = min(tm_target, _round_up((n_dst + 1) // 2, 128))
    tm, n_dst_p = _pick_tile(n_dst, tm_goal)
    tk, n_src_p = _pick_tile(n_src, tk_target)

    use_pallas = (n_dst_p // tm) * (n_src_p // tk) > 1
    if not use_pallas:
        # 1x1 grid: nothing to pipeline, pallas_call overhead dominates -> XLA.
        return GraphCache(n_dst, n_src, tm, tk, n_dst_p, n_src_p, False,
                          adj_f32, None, src_norm, None, None)

    # TODO(synk): int8 adjacency is exact only for 0/1 edges; if a non-binary
    # edge_weight were used, keep the adjacency in bf16/f32 here instead.
    adj_q = adj.astype(jnp.int8)
    pad_dst, pad_src = n_dst_p - n_dst, n_src_p - n_src
    if pad_dst or pad_src:
        adj_q = jnp.pad(adj_q, ((0, pad_dst), (0, pad_src)))
    # pad value 1.0 is safe because the padded adj rows/cols & feat rows are zero
    src_norm_p = (jnp.pad(src_norm, ((0, pad_src), (0, 0)), constant_values=1.0)
                  if pad_src else src_norm)
    dst_norm_p = (jnp.pad(dst_norm, ((0, pad_dst), (0, 0)), constant_values=1.0)
                  if pad_dst else dst_norm)
    return GraphCache(n_dst, n_src, tm, tk, n_dst_p, n_src_p, True,
                      adj_f32, adj_q, src_norm, src_norm_p, dst_norm_p)


# ----------------------------------------------------------------------------
# Kernel 1: per-src projection  h = (feat * src_norm) @ W   (bf16 out, f32 acc)
# f_in contraction is tiled (grid axis 1) with an f32 VMEM accumulator.
# (in_feats > out_feats path: project once, aggregate afterwards)
# ----------------------------------------------------------------------------
def _project_kernel(feat_ref, srcn_ref, w_ref, h_ref, acc_ref):
    f = pl.program_id(1)

    @pl.when(f == 0)
    def _():
        acc_ref[...] = jnp.zeros_like(acc_ref)

    # scale the small operand (features), never the adjacency; bf16 for the MXU
    x = (feat_ref[...] * srcn_ref[...]).astype(jnp.bfloat16)
    acc_ref[...] += jnp.dot(x, w_ref[...], preferred_element_type=jnp.float32)

    @pl.when(f == pl.num_programs(1) - 1)
    def _():
        h_ref[...] = acc_ref[...].astype(jnp.bfloat16)


# ----------------------------------------------------------------------------
# Kernel 2a: tiled SpMM over pre-projected h:  out = (adj @ h) * dst_norm + b
# ----------------------------------------------------------------------------
def _spmm_preprojected_kernel(adj_ref, h_ref, dstn_ref, b_ref, out_ref, acc_ref):
    k = pl.program_id(1)

    @pl.when(k == 0)
    def _():
        acc_ref[...] = jnp.zeros_like(acc_ref)

    # int8 0/1 adjacency -> bf16 (exact); bf16 x bf16 MXU, f32 accumulation
    adj = adj_ref[...].astype(jnp.bfloat16)
    acc_ref[...] += jnp.dot(adj, h_ref[...], preferred_element_type=jnp.float32)

    @pl.when(k == pl.num_programs(1) - 1)
    def _():
        out_ref[...] = acc_ref[...] * dstn_ref[...] + b_ref[...]


# ----------------------------------------------------------------------------
# Kernel 2b: tiled SpMM, projection fused into the epilogue:
#   out = ((adj @ feat_scaled) @ W) * dst_norm + b
# (in_feats <= out_feats path; feat is pre-scaled by src_norm outside)
# ----------------------------------------------------------------------------
def _spmm_project_kernel(adj_ref, feat_ref, w_ref, dstn_ref, b_ref,
                         out_ref, acc_ref):
    k = pl.program_id(1)

    @pl.when(k == 0)
    def _():
        acc_ref[...] = jnp.zeros_like(acc_ref)

    adj = adj_ref[...].astype(jnp.bfloat16)
    acc_ref[...] += jnp.dot(adj, feat_ref[...], preferred_element_type=jnp.float32)

    @pl.when(k == pl.num_programs(1) - 1)
    def _():
        agg = acc_ref[...].astype(jnp.bfloat16)        # one epilogue matmul per dst tile
        proj = jnp.dot(agg, w_ref[...], preferred_element_type=jnp.float32)
        out_ref[...] = proj * dstn_ref[...] + b_ref[...]


# ----------------------------------------------------------------------------
# plain-XLA GraphConv (norm='both') — reference and small-graph fallback
# ----------------------------------------------------------------------------
def _gcn_forward_xla(adj, feat, weight, bias):
    adj = adj.astype(jnp.float32)
    feat = feat.astype(jnp.float32)
    weight = weight.astype(jnp.float32)
    src_norm = lax.rsqrt(jnp.maximum(jnp.sum(adj, axis=0), 1.0))
    dst_norm = lax.rsqrt(jnp.maximum(jnp.sum(adj, axis=1), 1.0))
    feat_src = feat * src_norm[:, None]
    if weight.shape[0] > weight.shape[1]:           # in_feats > out_feats
        rst = adj @ (feat_src @ weight)
    else:
        rst = (adj @ feat_src) @ weight
    return rst * dst_norm[:, None] + bias


# ----------------------------------------------------------------------------
# fused forward
# ----------------------------------------------------------------------------
def gcn_forward_pallas(graph, feat, weight, bias, *,
                       tm_target: int = 1024, tk_target: int = 512,
                       tf_target: int = 512):
    """Fused GraphConv forward (norm='both', bias, no activation).

    `graph` is either a dense adjacency [n_dst, n_src] or a GraphCache from
    prepare_graph() (preferred — reuse it across layers / steps)."""
    if not isinstance(graph, GraphCache):
        graph = prepare_graph(graph, tm_target=tm_target, tk_target=tk_target)

    feat = feat.astype(jnp.float32)
    weight = weight.astype(jnp.float32)
    bias = bias.astype(jnp.float32)
    f_in, f_out = weight.shape

    if not graph.use_pallas:
        return _gcn_forward_xla(graph.adj, feat, weight, bias)

    n_dst, n_src = graph.n_dst, graph.n_src
    n_dst_p, n_src_p = graph.n_dst_p, graph.n_src_p
    tm, tk = graph.tm, graph.tk
    grid_m, grid_k = n_dst_p // tm, n_src_p // tk
    pad_src = n_src_p - n_src

    # lane-dense output; align to the 256x256 MXU on v6e/v7x once f_out > 128
    f_pad = 128 if f_out <= 128 else _round_up(f_out, 256)
    w_pad = jnp.pad(weight, ((0, 0), (0, f_pad - f_out))).astype(jnp.bfloat16)
    b_pad = jnp.pad(bias, (0, f_pad - f_out)).reshape(1, f_pad)

    if f_in > f_out:
        # ---- (1) project once: h = (feat * src_norm) @ W  (tiled over src rows
        #      and over the f_in contraction), bf16 output -----------------------
        tf, f_in_p = _pick_tile(f_in, tf_target)
        grid_f = f_in_p // tf
        feat_p = feat
        w_proj = w_pad
        if f_in_p != f_in:
            feat_p = jnp.pad(feat_p, ((0, 0), (0, f_in_p - f_in)))
            w_proj = jnp.pad(w_pad, ((0, f_in_p - f_in), (0, 0)))
        if pad_src:
            feat_p = jnp.pad(feat_p, ((0, pad_src), (0, 0)))

        proj_vmem = (2 * (tk * tf * 4 + tk * 4 + tf * f_pad * 2 + tk * f_pad * 2)
                     + tk * f_pad * 4)
        proj_cost = pl.CostEstimate(
            flops=int(2 * n_src_p * f_in_p * f_pad),
            transcendentals=0,
            bytes_accessed=int(n_src_p * f_in_p * 4 + n_src_p * 4
                               + grid_k * f_in_p * f_pad * 2
                               + n_src_p * f_pad * 2))
        h = pl.pallas_call(
            _project_kernel,
            out_shape=jax.ShapeDtypeStruct((n_src_p, f_pad), jnp.bfloat16),
            grid=(grid_k, grid_f),
            in_specs=[
                pl.BlockSpec((tk, tf), lambda s, f: (s, f)),
                pl.BlockSpec((tk, 1), lambda s, f: (s, 0)),
                pl.BlockSpec((tf, f_pad), lambda s, f: (f, 0)),
            ],
            out_specs=pl.BlockSpec((tk, f_pad), lambda s, f: (s, 0)),
            scratch_shapes=[pltpu.VMEM((tk, f_pad), jnp.float32)],
            compiler_params=pltpu.CompilerParams(
                dimension_semantics=("parallel", "arbitrary"),
                vmem_limit_bytes=_vmem_limit(proj_vmem)),
            cost_estimate=proj_cost,
        )(feat_p, graph.src_norm_p, w_proj)

        # ---- (2) tiled SpMM over int8 adj, epilogue = dst-norm + bias ----------
        spmm_vmem = (2 * (tm * tk + tk * f_pad * 2 + tm * 4 + f_pad * 4
                          + tm * f_pad * 4) + tm * f_pad * 4)
        spmm_cost = pl.CostEstimate(
            flops=int(2 * n_dst_p * n_src_p * f_pad),
            transcendentals=0,
            bytes_accessed=int(n_dst_p * n_src_p * 1            # adj (int8)
                               + grid_m * n_src_p * f_pad * 2   # h re-streamed
                               + n_dst_p * 4 + f_pad * 4
                               + n_dst_p * f_pad * 4))          # output
        out_p = pl.pallas_call(
            _spmm_preprojected_kernel,
            out_shape=jax.ShapeDtypeStruct((n_dst_p, f_pad), jnp.float32),
            grid=(grid_m, grid_k),
            in_specs=[
                pl.BlockSpec((tm, tk), lambda i, k: (i, k)),
                pl.BlockSpec((tk, f_pad), lambda i, k: (k, 0)),
                pl.BlockSpec((tm, 1), lambda i, k: (i, 0)),
                pl.BlockSpec((1, f_pad), lambda i, k: (0, 0)),
            ],
            out_specs=pl.BlockSpec((tm, f_pad), lambda i, k: (i, 0)),
            scratch_shapes=[pltpu.VMEM((tm, f_pad), jnp.float32)],
            compiler_params=pltpu.CompilerParams(
                dimension_semantics=("parallel", "arbitrary"),
                vmem_limit_bytes=_vmem_limit(spmm_vmem)),
            cost_estimate=spmm_cost,
        )(graph.adj_q, h, graph.dst_norm_p, b_pad)
    else:
        # pre-scale feat by src_norm ONCE (outside the kernel) and cast to bf16:
        # removes grid_m-fold redundant VPU work + one DMA stream per grid step.
        feat_s = (feat * graph.src_norm).astype(jnp.bfloat16)
        if pad_src:
            feat_s = jnp.pad(feat_s, ((0, pad_src), (0, 0)))

        spmm_vmem = (2 * (tm * tk + tk * f_in * 2 + f_in * f_pad * 2
                          + tm * 4 + f_pad * 4 + tm * f_pad * 4)
                     + tm * f_in * 4)
        spmm_cost = pl.CostEstimate(
            flops=int(2 * n_dst_p * n_src_p * f_in
                      + 2 * n_dst_p * f_in * f_pad),
            transcendentals=0,
            bytes_accessed=int(n_dst_p * n_src_p * 1
                               + grid_m * n_src_p * f_in * 2
                               + f_in * f_pad * 2 + n_dst_p * 4 + f_pad * 4
                               + n_dst_p * f_pad * 4))
        out_p = pl.pallas_call(
            _spmm_project_kernel,
            out_shape=jax.ShapeDtypeStruct((n_dst_p, f_pad), jnp.float32),
            grid=(grid_m, grid_k),
            in_specs=[
                pl.BlockSpec((tm, tk), lambda i, k: (i, k)),
                pl.BlockSpec((tk, f_in), lambda i, k: (k, 0)),
                pl.BlockSpec((f_in, f_pad), lambda i, k: (0, 0)),
                pl.BlockSpec((tm, 1), lambda i, k: (i, 0)),
                pl.BlockSpec((1, f_pad), lambda i, k: (0, 0)),
            ],
            out_specs=pl.BlockSpec((tm, f_pad), lambda i, k: (i, 0)),
            scratch_shapes=[pltpu.VMEM((tm, f_in), jnp.float32)],
            compiler_params=pltpu.CompilerParams(
                dimension_semantics=("parallel", "arbitrary"),
                vmem_limit_bytes=_vmem_limit(spmm_vmem)),
            cost_estimate=spmm_cost,
        )(graph.adj_q, feat_s, w_pad, graph.dst_norm_p, b_pad)

    # slice off the dst padding and the lane padding of the output features
    return out_p[:n_dst, :f_out]


def graph_conv_cache_reuse_forward(graph, feat, weight, bias,
                                   prev_layer_repeat, step, reuse_embedding):
    """Full GraphConvCacheReuse.forward semantics: returns (rst, cache_embedding).

    `graph` is a dense adjacency or a GraphCache (reuse it across steps/layers).
    prev_layer_repeat is a static python list of (cache_indices, reuse_indices)
    per step; reuse_embedding has shape [len(reuse_indices), out_feats]."""
    if not isinstance(graph, GraphCache):
        graph = prepare_graph(graph)
    rst = gcn_forward_pallas(graph, feat, weight, bias)
    f_out = rst.shape[1]

    # ---- cache-reuse scatter (host-side index bookkeeping, plain JAX) ----
    reuse_indices = np.asarray(prev_layer_repeat[step][1], dtype=np.int32)
    if reuse_indices.size > 0:
        full_dst_len = rst.shape[0] + reuse_indices.size
        unprune_indices = np.delete(np.arange(full_dst_len), reuse_indices)
        full_dst_feat = jnp.zeros((full_dst_len, f_out), dtype=jnp.float32)
        full_dst_feat = full_dst_feat.at[unprune_indices].set(rst)
        full_dst_feat = full_dst_feat.at[reuse_indices].set(
            reuse_embedding.astype(jnp.float32))
        rst = full_dst_feat

    # ---- cache gather for the next step (.detach() == stop_gradient) ----
    cache_embedding = jnp.zeros((0, f_out), dtype=jnp.float32)
    if step + 1 < len(prev_layer_repeat):
        cache_indices = np.asarray(prev_layer_repeat[step + 1][0], dtype=np.int32)
        if cache_indices.size > 0:
            cache_embedding = lax.stop_gradient(rst[cache_indices])

    return rst, cache_embedding


if __name__ == "__main__":
    key = jax.random.PRNGKey(0)
    k_adj, k_feat, k_w, k_reuse, k_feat2, k_w2, k_adj2 = jax.random.split(key, 7)

    # --- graph big enough to exercise the multi-tile Pallas path ---
    N = 384
    F_in, F_out = 256, 64            # in > out -> project-then-aggregate branch
    adj = (jax.random.uniform(k_adj, (N, N)) < 0.05).astype(jnp.float32)
    adj = jnp.maximum(adj, jnp.eye(N, dtype=jnp.float32))    # self loops
    feat = jax.random.normal(k_feat, (N, F_in), dtype=jnp.float32)
    xav = float(np.sqrt(6.0 / (F_in + F_out)))                # xavier_uniform_
    weight = jax.random.uniform(k_w, (F_in, F_out), jnp.float32, -xav, xav)
    bias = jnp.zeros((F_out,), dtype=jnp.float32)             # zeros_

    # graph-constant prologue computed ONCE and reused; small tiles so the test
    # exercises multi-step pipelined grids (3x3) on a small graph.
    graph = prepare_graph(adj, tm_target=128, tk_target=128)
    assert graph.use_pallas

    # project-then-aggregate branch (also tiles the f_in contraction)
    got = gcn_forward_pallas(graph, feat, weight, bias, tf_target=128)
    got = jax.block_until_ready(got)
    ref = _gcn_forward_xla(adj, feat, weight, bias)
    np.testing.assert_allclose(np.asarray(got), np.asarray(ref), rtol=2e-2, atol=2e-2)

    # aggregate-then-project branch (in_feats <= out_feats)
    F_in2, F_out2 = 64, 128
    feat2 = jax.random.normal(k_feat2, (N, F_in2), dtype=jnp.float32)
    xav2 = float(np.sqrt(6.0 / (F_in2 + F_out2)))
    weight2 = jax.random.uniform(k_w2, (F_in2, F_out2), jnp.float32, -xav2, xav2)
    bias2 = jnp.zeros((F_out2,), dtype=jnp.float32)
    got2 = gcn_forward_pallas(graph, feat2, weight2, bias2)
    got2 = jax.block_until_ready(got2)
    ref2 = _gcn_forward_xla(adj, feat2, weight2, bias2)
    np.testing.assert_allclose(np.asarray(got2), np.asarray(ref2), rtol=2e-2, atol=2e-2)

    # full GraphConvCacheReuse.forward semantics (scatter reuse rows, gather cache)
    prev_layer_repeat = [
        ([], [2, 5]),          # step 0: reuse rows 2 and 5 from reuse_embedding
        ([0, 3, 7], []),       # step 1: cache rows 0, 3, 7 of this step's output
    ]
    step = 0
    reuse_embedding = jax.random.normal(
        k_reuse, (len(prev_layer_repeat[step][1]), F_out), dtype=jnp.float32)
    rst, cache_embedding = graph_conv_cache_reuse_forward(
        graph, feat, weight, bias, prev_layer_repeat, step, reuse_embedding)
    rst = jax.block_until_ready(rst)
    cache_embedding = jax.block_until_ready(cache_embedding)
    assert rst.shape == (N + len(prev_layer_repeat[step][1]), F_out)
    assert cache_embedding.shape == (len(prev_layer_repeat[step + 1][0]), F_out)

    # small-graph fallback (1x1 grid -> plain XLA, no pallas_call overhead)
    Ns = 32
    adj_s = (jax.random.uniform(k_adj2, (Ns, Ns)) < 0.3).astype(jnp.float32)
    adj_s = jnp.maximum(adj_s, jnp.eye(Ns, dtype=jnp.float32))
    feat_s = feat[:Ns]
    got_s = gcn_forward_pallas(adj_s, feat_s, weight, bias)
    got_s = jax.block_until_ready(got_s)
    ref_s = _gcn_forward_xla(adj_s, feat_s, weight, bias)
    np.testing.assert_allclose(np.asarray(got_s), np.asarray(ref_s),
                               rtol=1e-5, atol=1e-5)

    print("KERNEL_OK")
</pallas_src>

<mosaic_0001>
module attributes {stable_mosaic.version = 11 : i64} {
  func.func @_project_kernel(%arg0: i32, %arg1: i32, %arg2: memref<128x128xf32, #tpu.memory_space<vmem>>, %arg3: memref<128x1xf32, #tpu.memory_space<vmem>>, %arg4: memref<128x128xbf16, #tpu.memory_space<vmem>>, %arg5: memref<128x128xbf16, #tpu.memory_space<vmem>>, %arg6: memref<128x128xf32, #tpu.memory_space<vmem>>) attributes {dimension_semantics = [#tpu.dimension_semantics<parallel>, #tpu.dimension_semantics<arbitrary>], iteration_bounds = array<i64: 3, 2>, scalar_prefetch = 0 : i64, scratch_operands = 1 : i64, tpu.core_type = #tpu.core_type<tc>, window_params = [{transform_indices = @transform_0, window_bounds = array<i64: 128, 128>}, {transform_indices = @transform_1, window_bounds = array<i64: 128, 1>}, {transform_indices = @transform_2, window_bounds = array<i64: 128, 128>}, {transform_indices = @transform_3, window_bounds = array<i64: 128, 128>}]} {
    %c0_i32 = arith.constant 0 : i32
    %0 = arith.cmpi eq, %arg1, %c0_i32 : i32
    %1 = arith.extui %0 : i1 to i32
    %c0_i32_0 = arith.constant 0 : i32
    %2 = arith.cmpi ne, %1, %c0_i32_0 : i32
    scf.if %2 {
      %cst_11 = arith.constant 0.000000e+00 : f32
      %16 = vector.broadcast %cst_11 : f32 to vector<128x128xf32>
      %c0_12 = arith.constant 0 : index
      %c0_13 = arith.constant 0 : index
      %17 = vector.load %arg6[%c0_12, %c0_13] : memref<128x128xf32, #tpu.memory_space<vmem>>, vector<128x128xf32>
      tpu.vector_store %arg6[%c0_12, %c0_13], %16 {strides = array<i32>} : memref<128x128xf32, #tpu.memory_space<vmem>>, vector<128x128xf32>,
    } else {
    }
    %c0 = arith.constant 0 : index
    %c0_1 = arith.constant 0 : index
    %3 = vector.load %arg2[%c0, %c0_1] : memref<128x128xf32, #tpu.memory_space<vmem>>, vector<128x128xf32>
    %c0_2 = arith.constant 0 : index
    %c0_3 = arith.constant 0 : index
    %4 = vector.load %arg3[%c0_2, %c0_3] : memref<128x1xf32, #tpu.memory_space<vmem>>, vector<128x1xf32>
    %5 = vector.broadcast %4 : vector<128x1xf32> to vector<128x128xf32>
    %6 = arith.mulf %3, %5 : vector<128x128xf32>
    %7 = arith.truncf %6 : vector<128x128xf32> to vector<128x128xbf16>
    %c0_4 = arith.constant 0 : index
    %c0_5 = arith.constant 0 : index
    %8 = vector.load %arg6[%c0_4, %c0_5] : memref<128x128xf32, #tpu.memory_space<vmem>>, vector<128x128xf32>
    %c0_6 = arith.constant 0 : index
    %c0_7 = arith.constant 0 : index
    %9 = vector.load %arg4[%c0_6, %c0_7] : memref<128x128xbf16, #tpu.memory_space<vmem>>, vector<128x128xbf16>
    %cst = arith.constant dense<0.000000e+00> : vector<128x128xf32>
    %10 = tpu.matmul %7, %9, %cst {dimension_numbers = #tpu.dot_dimension_numbers<[1], [0], [0], [1], [0, 0, 1, 1], [], []>} : vector<128x128xbf16>, vector<128x128xbf16>, vector<128x128xf32> -> vector<128x128xf32>
    %11 = arith.addf %8, %10 : vector<128x128xf32>
    %c0_8 = arith.constant 0 : index
    %c0_9 = arith.constant 0 : index
    %12 = vector.load %arg6[%c0_8, %c0_9] : memref<128x128xf32, #tpu.memory_space<vmem>>, vector<128x128xf32>
    tpu.vector_store %arg6[%c0_8, %c0_9], %11 {strides = array<i32>} : memref<128x128xf32, #tpu.memory_space<vmem>>, vector<128x128xf32>,
    %c1_i32 = arith.constant 1 : i32
    %13 = arith.cmpi eq, %arg1, %c1_i32 : i32
    %14 = arith.extui %13 : i1 to i32
    %c0_i32_10 = arith.constant 0 : i32
    %15 = arith.cmpi ne, %14, %c0_i32_10 : i32
    scf.if %15 {
      %c0_11 = arith.constant 0 : index
      %c0_12 = arith.constant 0 : index
      %16 = vector.load %arg6[%c0_11, %c0_12] : memref<128x128xf32, #tpu.memory_space<vmem>>, vector<128x128xf32>
      %17 = arith.truncf %16 : vector<128x128xf32> to vector<128x128xbf16>
      %c0_13 = arith.constant 0 : index
      %c0_14 = arith.constant 0 : index
      %18 = vector.load %arg5[%c0_13, %c0_14] : memref<128x128xbf16, #tpu.memory_space<vmem>>, vector<128x128xbf16>
      tpu.vector_store %arg5[%c0_13, %c0_14], %17 {strides = array<i32>} : memref<128x128xbf16, #tpu.memory_space<vmem>>, vector<128x128xbf16>,
    } else {
    }
    return
  }
  func.func @transform_0(%arg0: i32, %arg1: i32) -> (i32, i32) {
    %c0_i32 = arith.constant 0 : i32
    return %arg0, %arg1 : i32, i32
  }
  func.func @transform_1(%arg0: i32, %arg1: i32) -> (i32, i32) {
    %c0_i32 = arith.constant 0 : i32
    %c0_i32_0 = arith.constant 0 : i32
    return %arg0, %c0_i32 : i32, i32
  }
  func.func @transform_2(%arg0: i32, %arg1: i32) -> (i32, i32) {
    %c0_i32 = arith.constant 0 : i32
    %c0_i32_0 = arith.constant 0 : i32
    return %arg1, %c0_i32 : i32, i32
  }
  func.func @transform_3(%arg0: i32, %arg1: i32) -> (i32, i32) {
    %c0_i32 = arith.constant 0 : i32
    %c0_i32_0 = arith.constant 0 : i32
    return %arg0, %c0_i32 : i32, i32
  }
}

</mosaic_0001>

<llo_original>
// kernel: tpu_custom_call.1
$region0: #{tpu_custom_call.1}
  #allocation0 [shape = 'u32[]', space=smem, size = 0x4, offset = 0x4, fixed_abs, tag = 'smem constant byte address 0x4 - core index']
  #allocation1 [shape = 'u32[144,128]{1,0:T(1,128)}', space=vmem, size = 0x12000, scoped, tag = 'internal scratch']
  #allocation2 [shape = 'f32[128,128]{1,0:T(8,128)}', space=vmem, size = 0x10000, scoped, tag = 'scratch operand']
  %s0 = inlined_call_operand.hbm [shape: f32[384,256], index: 0, kind: input, shape index: {}]
  %s1 = inlined_call_operand.vmem [shape: f32[384,1], index: 1, kind: input, shape index: {}]
  %s2 = inlined_call_operand.vmem [shape: bf16[256,128], index: 2, kind: input, shape index: {}]
  %s3 = inlined_call_operand.hbm [shape: bf16[384,128], index: 3, kind: output, shape index: {}]
  %s4 = sld [smem:[#allocation0]]
  $region57: #{tpu_custom_call.1} parent=0
    _
  %s6 = ssub.s32 1, %s4
  %s7 = scalar_select 0, %s6, %s4
  $region1: #{tpu_custom_call.1} parent=0
    #allocation3 [shape = 'u8[131072]{0}', space=vmem, size = 0x20000, scoped, tag = 'input window, operand 0']
    #allocation4 [shape = 's32[2]{0}', space=sflag, size = 0x8, scoped, tag = 'scoped memory for tpu_custom_call.1']
    #allocation5 [shape = 's32[2]{0}', space=sflag, size = 0x8, scoped, tag = 'scoped memory for tpu_custom_call.1']
    #allocation6 [shape = 'u8[65536]{0}', space=vmem, size = 0x10000, scoped, tag = 'output window, operand 0']
    %8 = vsyncpa [#allocation4], 0
    %s9 = scalar_lea.sflag [#allocation4], 1
    %10 = vsyncpa %s9, 0
    %11 = vsyncpa [#allocation5], 0
    %s12 = scalar_lea.sflag [#allocation5], 1
    %13 = vsyncpa %s12, 0
    loop: start=0, step=1, limit=8
    $region2: #{tpu_custom_call.1} parent=1 // loop_pre_header
      _
    $region3: #{tpu_custom_call.1} parent=1 // loop_header
      %s15 = sphi 0, %s19
      %p16 = scmp.ge.s32.totalorder %s15, 8
      %s22 = sphi 0, %s34
      %s23 = sphi 0, %s30
      %s24 = sphi 0, %s22
      %s25 = sphi 0, %s23
      %s26 = sphi 0, %s24
      %s27 = sphi 0, %s25
      %s39 = sphi 0, %s41
      %s42 = sphi 0, %s39
      %s43 = sphi 0, %s42
      %s59 = sphi 0, %s43
      %s65 = sphi 0, %s67
      %s68 = sphi 0, %s65
      %s69 = sphi 0, %s68
      %s85 = sphi 0, %s69
      %s91 = sphi 0, %s93
      %s94 = sphi 0, %s91
      %s95 = sphi 0, %s94
      %s111 = sphi 0, %s95
      %s117 = sphi 0, %s119
      %s120 = sphi 0, %s117
      %s121 = sphi 0, %s120
      %s137 = sphi 0, %s121
    $region4: #{tpu_custom_call.1} parent=1 // loop_header_branch
      %18 = sbr.rel (%p16) target = $region8
    $region5: #{tpu_custom_call.1} parent=1 // loop_body
      %s20 = ssub.s32 %s15, 1
      %s21 = ssub.s32 %s15, 2
      %s28 = sadd.s32 1, %s23
      %p29 = scmp.ge.s32.totalorder %s28, 2
      %s30 = scalar_select %p29, 0, %s28
      %s31 = sadd.s32 1, %s22
      %s32 = scalar_select %p29, %s31, %s22
      %p33 = scmp.ge.s32.totalorder %s32, 3
      %s34 = scalar_select %p33, 0, %s32
      %s35 = ssub.s32 %s22, %s34
      %s36 = ssub.s32 %s23, %s30
      %s37 = sor.u32 %s35, %s36
      %p38 = scmp.eq.s32.totalorder %s37, 0
      %s40 = sadd.s32 %s39, 1
      %s41 = scalar_select %p38, %s39, %s40
      %p44 = pneg %p38
      %p45 = scmp.eq.s32.totalorder %s15, 5
      %p46 = por %p44, %p45
      %p47 = scmp.ne.s32.totalorder %s39, %s42
      %p48 = scmp.eq.s32.totalorder %s15, 0
      %p49 = por %p47, %p48
      %p50 = scmp.ne.s32.totalorder %s39, %s42
      %p51 = scmp.eq.s32.totalorder %s20, 5
      %p52 = por %p50, %p51
      %p53 = scmp.ne.s32.totalorder %s42, %s43
      %p54 = scmp.eq.s32.totalorder %s20, 0
      %p55 = por %p53, %p54
      %p56 = scmp.ne.s32.totalorder %s42, %s43
      %p57 = scmp.eq.s32.totalorder %s21, 5
      %p58 = por %p56, %p57
      %p60 = scmp.ne.s32.totalorder %s43, %s59
      %p61 = scmp.eq.s32.totalorder %s21, 0
      %p62 = por %p60, %p61
      %s63 = ssub.s32 %s22, %s34
      %p64 = scmp.eq.s32.totalorder %s63, 0
      %s66 = sadd.s32 %s65, 1
      %s67 = scalar_select %p64, %s65, %s66
      %p70 = pneg %p64
      %p71 = scmp.eq.s32.totalorder %s15, 5
      %p72 = por %p70, %p71
      %p73 = scmp.ne.s32.totalorder %s65, %s68
      %p74 = scmp.eq.s32.totalorder %s15, 0
      %p75 = por %p73, %p74
      %p76 = scmp.ne.s32.totalorder %s65, %s68
      %p77 = scmp.eq.s32.totalorder %s20, 5
      %p78 = por %p76, %p77
      %p79 = scmp.ne.s32.totalorder %s68, %s69
      %p80 = scmp.eq.s32.totalorder %s20, 0
      %p81 = por %p79, %p80
      %p82 = scmp.ne.s32.totalorder %s68, %s69
      %p83 = scmp.eq.s32.totalorder %s21, 5
      %p84 = por %p82, %p83
      %p86 = scmp.ne.s32.totalorder %s69, %s85
      %p87 = scmp.eq.s32.totalorder %s21, 0
      %p88 = por %p86, %p87
      %s89 = ssub.s32 %s23, %s30
      %p90 = scmp.eq.s32.totalorder %s89, 0
      %s92 = sadd.s32 %s91, 1
      %s93 = scalar_select %p90, %s91, %s92
      %p96 = pneg %p90
      %p97 = scmp.eq.s32.totalorder %s15, 5
      %p98 = por %p96, %p97
      %p99 = scmp.ne.s32.totalorder %s91, %s94
      %p100 = scmp.eq.s32.totalorder %s15, 0
      %p101 = por %p99, %p100
      %p102 = scmp.ne.s32.totalorder %s91, %s94
      %p103 = scmp.eq.s32.totalorder %s20, 5
      %p104 = por %p102, %p103
      %p105 = scmp.ne.s32.totalorder %s94, %s95
      %p106 = scmp.eq.s32.totalorder %s20, 0
      %p107 = por %p105, %p106
      %p108 = scmp.ne.s32.totalorder %s94, %s95
      %p109 = scmp.eq.s32.totalorder %s21, 5
      %p110 = por %p108, %p109
      %p112 = scmp.ne.s32.totalorder %s95, %s111
      %p113 = scmp.eq.s32.totalorder %s21, 0
      %p114 = por %p112, %p113
      %s115 = ssub.s32 %s22, %s34
      %p116 = scmp.eq.s32.totalorder %s115, 0
      %s118 = sadd.s32 %s117, 1
      %s119 = scalar_select %p116, %s117, %s118
      %p122 = pneg %p116
      %p123 = scmp.eq.s32.totalorder %s15, 5
      %p124 = por %p122, %p123
      %p125 = scmp.ne.s32.totalorder %s117, %s120
      %p126 = scmp.eq.s32.totalorder %s15, 0
      %p127 = por %p125, %p126
      %p128 = scmp.ne.s32.totalorder %s117, %s120
      %p129 = scmp.eq.s32.totalorder %s20, 5
      %p130 = por %p128, %p129
      %p131 = scmp.ne.s32.totalorder %s120, %s121
      %p132 = scmp.eq.s32.totalorder %s20, 0
      %p133 = por %p131, %p132
      %p134 = scmp.ne.s32.totalorder %s120, %s121
      %p135 = scmp.eq.s32.totalorder %s21, 5
      %p136 = por %p134, %p135
      %p138 = scmp.ne.s32.totalorder %s121, %s137
      %p139 = scmp.eq.s32.totalorder %s21, 0
      %p140 = por %p138, %p139
      %p141 = scmp.le.s32.totalorder 1, %s15
      %p142 = scmp.lt.s32.totalorder %s15, 7
      %p143 = pnand %p141, %p142
      %p144 = pneg %p143
      // Predicated region
      $region9: #{tpu_custom_call.1} parent=5 // pred_check
        _
      $region10: #{tpu_custom_call.1} parent=5 // pred_check_branch
        %146 = sbr.rel (%p143) target = $region12
      $region11: #{tpu_custom_call.1} parent=5 // pred_region
        %s147 = ssub.s32 %s15, 1
      $region12: #{tpu_custom_call.1} parent=5 // pred_fallthru
        _
      %p148 = scmp.lt.s32.totalorder %s15, 6
      // Predicated region
      $region13: #{tpu_custom_call.1} parent=5 // pred_check
        %p149 = pneg %p148
      $region14: #{tpu_custom_call.1} parent=5 // pred_check_branch
        %151 = sbr.rel (%p149) target = $region16
      $region15: #{tpu_custom_call.1} parent=5 // pred_region
        // Predicated region
        $region17: #{tpu_custom_call.1} parent=15 // pred_check
          %p152 = pneg %p49
        $region18: #{tpu_custom_call.1} parent=15 // pred_check_branch
          %154 = sbr.rel (%p152) target = $region20
        $region19: #{tpu_custom_call.1} parent=15 // pred_region
          %s155 = sand.u32 %s39, 1
          %s156 = scalar_lea.sflag [#allocation4], %s155
          %s157 = sand.u32 %s39, 1
          %s158 = smul.addr %s157, 128
          %s159 = scalar_lea.vmem [#allocation3], %s158
          %s160 = smul.u32 16, %s22
          %s162 = ssub.s32 2048, 2048
          %163 = vsyncadd %s156, %s162
          %s164 = smul.addr %s160, 2
          %s165 = sadd.s32 %s23, %s164
          %s166 = smul.addr %s165, 128
          %s167 = scalar_lea.hbm %s0, %s166
          %s168 = sshll.u32 %s159, 4
          %s169 = int_to_ptr.vmem [resolvable:$true] %s168
          %174 = dma.hbm_to_vmem [thread:$0]  %s167, 2048, %s169, %s156, 256, 128, 8
        $region20: #{tpu_custom_call.1} parent=15 // pred_fallthru
          _
        // Predicated region
        $region21: #{tpu_custom_call.1} parent=15 // pred_check
          %p175 = pneg %p75
        $region22: #{tpu_custom_call.1} parent=15 // pred_check_branch
          %177 = sbr.rel (%p175) target = $region24
        $region23: #{tpu_custom_call.1} parent=15 // pred_region
          %s178 = smul.u32 16, %s22
          %p179 = scmp.lt.s32.totalorder %s178, 47
          %s180 = scalar_select %p179, %s178, 47
          %s181 = smul.addr %s180, 8
          %s182 = scalar_lea.vmem %s1, %s181
          %s183 = smul.u32 16, %s22
        $region24: #{tpu_custom_call.1} parent=15 // pred_fallthru
          _
        // Predicated region
        $region25: #{tpu_custom_call.1} parent=15 // pred_check
          %p184 = pneg %p101
        $region26: #{tpu_custom_call.1} parent=15 // pred_check_branch
          %186 = sbr.rel (%p184) target = $region28
        $region27: #{tpu_custom_call.1} parent=15 // pred_region
          %s187 = smul.u32 16, %s23
          %p188 = scmp.lt.s32.totalorder %s187, 31
          %s189 = scalar_select %p188, %s187, 31
          %s190 = smul.addr %s189, 4
          %s191 = scalar_lea.vmem %s2, %s190
          %s192 = smul.u32 16, %s23
        $region28: #{tpu_custom_call.1} parent=15 // pred_fallthru
          _
      $region16: #{tpu_custom_call.1} parent=5 // pred_fallthru
        _
      %p193 = scmp.le.s32.totalorder 1, %s15
      %p194 = scmp.lt.s32.totalorder %s15, 7
      %p195 = pnand %p193, %p194
      %p196 = pneg %p195
      // Predicated region
      $region29: #{tpu_custom_call.1} parent=5 // pred_check
        _
      $region30: #{tpu_custom_call.1} parent=5 // pred_check_branch
        %198 = sbr.rel (%p195) target = $region32
      $region31: #{tpu_custom_call.1} parent=5 // pred_region
        %s199 = ssub.s32 %s15, 1
        %s200 = sand.u32 %s42, 1
        %s201 = scalar_lea.sflag [#allocation4], %s200
        %s202 = sand.u32 %s42, 1
        %s203 = smul.addr %s202, 128
        %s204 = scalar_lea.vmem [#allocation3], %s203
        // Predicated region
        $region33: #{tpu_custom_call.1} parent=31 // pred_check
          %p205 = pneg %p55
        $region34: #{tpu_custom_call.1} parent=31 // pred_check_branch
          %207 = sbr.rel (%p205) target = $region36
        $region35: #{tpu_custom_call.1} parent=31 // pred_region
          %208 = dma.done %s201, 2048
        $region36: #{tpu_custom_call.1} parent=31 // pred_fallthru
          _
        %s209 = sand.u32 %s42, 1
        %s210 = scalar_lea.sflag [#allocation4], %s209
        %s211 = sand.u32 %s42, 1
        %s212 = smul.addr %s211, 128
        %s213 = scalar_lea.vmem [#allocation3], %s212
        %p214 = pneg %p55
        %p215 = pneg %p52
        %s216 = smul.u32 16, %s24
        %p217 = scmp.lt.s32.totalorder %s216, 47
        %s218 = scalar_select %p217, %s216, 47
        %s219 = smul.addr %s218, 8
        %s220 = scalar_lea.vmem %s1, %s219
        %p221 = pneg %p81
        %p222 = pneg %p78
        %s223 = smul.u32 16, %s25
        %p224 = scmp.lt.s32.totalorder %s223, 31
        %s225 = scalar_select %p224, %s223, 31
        %s226 = smul.addr %s225, 4
        %s227 = scalar_lea.vmem %s2, %s226
        %p228 = pneg %p107
        %p229 = pneg %p104
        %p230 = pneg %p133
        %p231 = pneg %p130
        %s232 = sand.u32 %s120, 1
        %s233 = scalar_lea.sflag [#allocation5], %s232
        %s234 = sand.u32 %s120, 1
        %s235 = smul.addr %s234, 64
        %s236 = scalar_lea.vmem [#allocation6], %s235
        %s237 = smul.u32 16, %s24
        %s238 = smul.u32 16, %s24
        %p239 = scmp.lt.s32.totalorder %s238, 47
        %s240 = scalar_select %p239, %s238, 47
        %s241 = smul.addr %s240, 8
        %s242 = scalar_lea.vmem %s1, %s241
        %s243 = smul.u32 16, %s24
        %s244 = smul.u32 16, %s25
        %p245 = scmp.lt.s32.totalorder %s244, 31
        %s246 = scalar_select %p245, %s244, 31
        %s247 = smul.addr %s246, 4
        %s248 = scalar_lea.vmem %s2, %s247
        %s249 = smul.u32 16, %s25
        %s250 = smul.u32 16, %s24
        %p252 = scmp.eq.s32.totalorder %s25, 0
        // Predicated region
        $region37: #{tpu_custom_call.1} parent=31 // pred_check
          %p253 = pneg %p252
        $region38: #{tpu_custom_call.1} parent=31 // pred_check_branch
          %255 = sbr.rel (%p253) target = $region40
        $region39: #{tpu_custom_call.1} parent=31 // pred_region
          %256 = vst [vmem:[#allocation2] sm:$0xff] 0.0
          %257 = vst [vmem:[#allocation2 + $0x8] sm:$0xff] 0.0
          %258 = vst [vmem:[#allocation2 + $0x10] sm:$0xff] 0.0
          %259 = vst [vmem:[#allocation2 + $0x18] sm:$0xff] 0.0
          %260 = vst [vmem:[#allocation2 + $0x20] sm:$0xff] 0.0
          %261 = vst [vmem:[#allocation2 + $0x28] sm:$0xff] 0.0
          %262 = vst [vmem:[#allocation2 + $0x30] sm:$0xff] 0.0
          %263 = vst [vmem:[#allocation2 + $0x38] sm:$0xff] 0.0
          %264 = vst [vmem:[#allocation2 + $0x40] sm:$0xff] 0.0
          %265 = vst [vmem:[#allocation2 + $0x48] sm:$0xff] 0.0
          %266 = vst [vmem:[#allocation2 + $0x50] sm:$0xff] 0.0
          %267 = vst [vmem:[#allocation2 + $0x58] sm:$0xff] 0.0
          %268 = vst [vmem:[#allocation2 + $0x60] sm:$0xff] 0.0
          %269 = vst [vmem:[#allocation2 + $0x68] sm:$0xff] 0.0
          %270 = vst [vmem:[#allocation2 + $0x70] sm:$0xff] 0.0
          %271 = vst [vmem:[#allocation2 + $0x78] sm:$0xff] 0.0
        $region40: #{tpu_custom_call.1} parent=31 // pred_fallthru
          _
        %v272 = vld [vmem:[%s204] sm:$0xff]
        %v273 = vld [vmem:[%s204 + $0x8] sm:$0xff]
        %v274 = vld [vmem:[%s204 + $0x10] sm:$0xff]
        %v275 = vld [vmem:[%s204 + $0x18] sm:$0xff]
        %v276 = vld [vmem:[%s204 + $0x20] sm:$0xff]
        %v277 = vld [vmem:[%s204 + $0x28] sm:$0xff]
        %v278 = vld [vmem:[%s204 + $0x30] sm:$0xff]
        %v279 = vld [vmem:[%s204 + $0x38] sm:$0xff]
        %v280 = vld [vmem:[%s204 + $0x40] sm:$0xff]
        %v281 = vld [vmem:[%s204 + $0x48] sm:$0xff]
        %v282 = vld [vmem:[%s204 + $0x50] sm:$0xff]
        %v283 = vld [vmem:[%s204 + $0x58] sm:$0xff]
        %v284 = vld [vmem:[%s204 + $0x60] sm:$0xff]
        %v285 = vld [vmem:[%s204 + $0x68] sm:$0xff]
        %v286 = vld [vmem:[%s204 + $0x70] sm:$0xff]
        %v287 = vld [vmem:[%s204 + $0x78] sm:$0xff]
        %v288 = vld [vmem:[%s242] sm:$0xff]
        %v289 = vld [vmem:[%s242 + $0x8] sm:$0xff]
        %v290 = vld [vmem:[%s242 + $0x10] sm:$0xff]
        %v291 = vld [vmem:[%s242 + $0x18] sm:$0xff]
        %v292 = vld [vmem:[%s242 + $0x20] sm:$0xff]
        %v293 = vld [vmem:[%s242 + $0x28] sm:$0xff]
        %v294 = vld [vmem:[%s242 + $0x30] sm:$0xff]
        %v295 = vld [vmem:[%s242 + $0x38] sm:$0xff]
        %v296 = vld [vmem:[%s242 + $0x40] sm:$0xff]
        %v297 = vld [vmem:[%s242 + $0x48] sm:$0xff]
        %v298 = vld [vmem:[%s242 + $0x50] sm:$0xff]
        %v299 = vld [vmem:[%s242 + $0x58] sm:$0xff]
        %v300 = vld [vmem:[%s242 + $0x60] sm:$0xff]
        %v301 = vld [vmem:[%s242 + $0x68] sm:$0xff]
        %v302 = vld [vmem:[%s242 + $0x70] sm:$0xff]
        %v303 = vld [vmem:[%s242 + $0x78] sm:$0xff]
        %305 = vset.pattern.permute.xlu0 0
        %306 = vperm.xlu0 %305, %v288
        %v307 = vpop.permute.xlu0 %306
        %310 = vset.pattern.permute.xlu0 0
        %311 = vperm.xlu0 %310, %v289
        %v312 = vpop.permute.xlu0 %311
        %315 = vset.pattern.permute.xlu0 0
        %316 = vperm.xlu0 %315, %v290
        %v317 = vpop.permute.xlu0 %316
        %320 = vset.pattern.permute.xlu0 0
        %321 = vperm.xlu0 %320, %v291
        %v322 = vpop.permute.xlu0 %321
        %325 = vset.pattern.permute.xlu0 0
        %326 = vperm.xlu0 %325, %v292
        %v327 = vpop.permute.xlu0 %326
        %330 = vset.pattern.permute.xlu0 0
        %331 = vperm.xlu0 %330, %v293
        %v332 = vpop.permute.xlu0 %331
        %335 = vset.pattern.permute.xlu0 0
        %336 = vperm.xlu0 %335, %v294
        %v337 = vpop.permute.xlu0 %336
        %340 = vset.pattern.permute.xlu0 0
        %341 = vperm.xlu0 %340, %v295
        %v342 = vpop.permute.xlu0 %341
        %345 = vset.pattern.permute.xlu0 0
        %346 = vperm.xlu0 %345, %v296
        %v347 = vpop.permute.xlu0 %346
        %350 = vset.pattern.permute.xlu0 0
        %351 = vperm.xlu0 %350, %v297
        %v352 = vpop.permute.xlu0 %351
        %355 = vset.pattern.permute.xlu0 0
        %356 = vperm.xlu0 %355, %v298
        %v357 = vpop.permute.xlu0 %356
        %360 = vset.pattern.permute.xlu0 0
        %361 = vperm.xlu0 %360, %v299
        %v362 = vpop.permute.xlu0 %361
        %365 = vset.pattern.permute.xlu0 0
        %366 = vperm.xlu0 %365, %v300
        %v367 = vpop.permute.xlu0 %366
        %370 = vset.pattern.permute.xlu0 0
        %371 = vperm.xlu0 %370, %v301
        %v372 = vpop.permute.xlu0 %371
        %375 = vset.pattern.permute.xlu0 0
        %376 = vperm.xlu0 %375, %v302
        %v377 = vpop.permute.xlu0 %376
        %380 = vset.pattern.permute.xlu0 0
        %381 = vperm.xlu0 %380, %v303
        %v382 = vpop.permute.xlu0 %381
        %v384 = vmul.f32 %v272, %v307
        %v385 = vmul.f32 %v273, %v312
        %v386 = vmul.f32 %v274, %v317
        %v387 = vmul.f32 %v275, %v322
        %v388 = vmul.f32 %v276, %v327
        %v389 = vmul.f32 %v277, %v332
        %v390 = vmul.f32 %v278, %v337
        %v391 = vmul.f32 %v279, %v342
        %v392 = vmul.f32 %v280, %v347
        %v393 = vmul.f32 %v281, %v352
        %v394 = vmul.f32 %v282, %v357
        %v395 = vmul.f32 %v283, %v362
        %v396 = vmul.f32 %v284, %v367
        %v397 = vmul.f32 %v285, %v372
        %v398 = vmul.f32 %v286, %v377
        %v399 = vmul.f32 %v287, %v382
        %v400 = vpack.c.bf16 %v385, %v384
        %v401 = vpack.c.bf16 %v387, %v386
        %v402 = vpack.c.bf16 %v389, %v388
        %v403 = vpack.c.bf16 %v391, %v390
        %v404 = vpack.c.bf16 %v393, %v392
        %v405 = vpack.c.bf16 %v395, %v394
        %v406 = vpack.c.bf16 %v397, %v396
        %v407 = vpack.c.bf16 %v399, %v398
        %v408 = vld [vmem:[#allocation2] sm:$0xff]
        %v409 = vld [vmem:[#allocation2 + $0x8] sm:$0xff]
        %v410 = vld [vmem:[#allocation2 + $0x10] sm:$0xff]
        %v411 = vld [vmem:[#allocation2 + $0x18] sm:$0xff]
        %v412 = vld [vmem:[#allocation2 + $0x20] sm:$0xff]
        %v413 = vld [vmem:[#allocation2 + $0x28] sm:$0xff]
        %v414 = vld [vmem:[#allocation2 + $0x30] sm:$0xff]
        %v415 = vld [vmem:[#allocation2 + $0x38] sm:$0xff]
        %v416 = vld [vmem:[#allocation2 + $0x40] sm:$0xff]
        %v417 = vld [vmem:[#allocation2 + $0x48] sm:$0xff]
        %v418 = vld [vmem:[#allocation2 + $0x50] sm:$0xff]
        %v419 = vld [vmem:[#allocation2 + $0x58] sm:$0xff]
        %v420 = vld [vmem:[#allocation2 + $0x60] sm:$0xff]
        %v421 = vld [vmem:[#allocation2 + $0x68] sm:$0xff]
        %v422 = vld [vmem:[#allocation2 + $0x70] sm:$0xff]
        %v423 = vld [vmem:[#allocation2 + $0x78] sm:$0xff]
        %v424 = vld [vmem:[%s248] sm:$0xf]
        %v425 = vld [vmem:[%s248 + $0x4] sm:$0xf]
        %v426 = vld [vmem:[%s248 + $0x8] sm:$0xf]
        %v427 = vld [vmem:[%s248 + $0xc] sm:$0xf]
        %v428 = vld [vmem:[%s248 + $0x10] sm:$0xf]
        %v429 = vld [vmem:[%s248 + $0x14] sm:$0xf]
        %v430 = vld [vmem:[%s248 + $0x18] sm:$0xf]
        %v431 = vld [vmem:[%s248 + $0x1c] sm:$0xf]
        %v432 = vld [vmem:[%s248 + $0x20] sm:$0xf]
        %v433 = vld [vmem:[%s248 + $0x24] sm:$0xf]
        %v434 = vld [vmem:[%s248 + $0x28] sm:$0xf]
        %v435 = vld [vmem:[%s248 + $0x2c] sm:$0xf]
        %v436 = vld [vmem:[%s248 + $0x30] sm:$0xf]
        %v437 = vld [vmem:[%s248 + $0x34] sm:$0xf]
        %v438 = vld [vmem:[%s248 + $0x38] sm:$0xf]
        %v439 = vld [vmem:[%s248 + $0x3c] sm:$0xf]
        %v456 = vunpack.c.l.b16 %v424
        %v457 = vunpack.c.l.b16 %v425
        %v458 = vunpack.c.l.b16 %v426
        %v459 = vunpack.c.l.b16 %v427
        %v460 = vunpack.c.l.b16 %v428
        %v461 = vunpack.c.l.b16 %v429
        %v462 = vunpack.c.l.b16 %v430
        %v463 = vunpack.c.l.b16 %v431
        %v464 = vunpack.c.l.b16 %v432
        %v465 = vunpack.c.l.b16 %v433
        %v466 = vunpack.c.l.b16 %v434
        %v467 = vunpack.c.l.b16 %v435
        %v468 = vunpack.c.l.b16 %v436
        %v469 = vunpack.c.l.b16 %v437
        %v470 = vunpack.c.l.b16 %v438
        %v471 = vunpack.c.l.b16 %v439
        %v472 = vpack.c.b16 %v457, %v456
        %v473 = vpack.c.b16 %v459, %v458
        %v474 = vpack.c.b16 %v461, %v460
        %v475 = vpack.c.b16 %v463, %v462
        %v476 = vpack.c.b16 %v465, %v464
        %v477 = vpack.c.b16 %v467, %v466
        %v478 = vpack.c.b16 %v469, %v468
        %v479 = vpack.c.b16 %v471, %v470
        %488 = vmatprep.subr.bf16.mxu0 0
        %489 = vmatpush1.bf16.msra.mxu0 %v472
        %490 = vmatprep.subr.bf16.mxu0 0
        %491 = vmatpush1.bf16.msra.mxu0 %v473
        %492 = vmatprep.subr.bf16.mxu0 0
        %493 = vmatpush1.bf16.msra.mxu0 %v474
        %494 = vmatprep.subr.bf16.mxu0 0
        %495 = vmatpush1.bf16.msra.mxu0 %v475
        %496 = vmatprep.subr.bf16.mxu0 0
        %497 = vmatpush1.bf16.msra.mxu0 %v476
        %498 = vmatprep.subr.bf16.mxu0 0
        %499 = vmatpush1.bf16.msra.mxu0 %v477
        %500 = vmatprep.subr.bf16.mxu0 0
        %501 = vmatpush1.bf16.msra.mxu0 %v478
        %502 = vmatprep.subr.bf16.mxu0 0
        %503 = vmatpush1.bf16.msra.mxu0 %v479
        %504 = vmatprep.subr.bf16.mxu0 0
        %505 = vmatpush1.bf16.msra.mxu0 0
        %506 = vmatprep.subr.bf16.mxu0 0
        %507 = vmatpush1.bf16.msra.mxu0 0
        %508 = vmatprep.subr.bf16.mxu0 0
        %509 = vmatpush1.bf16.msra.mxu0 0
        %510 = vmatprep.subr.bf16.mxu0 0
        %511 = vmatpush1.bf16.msra.mxu0 0
        %512 = vmatprep.subr.bf16.mxu0 0
        %513 = vmatpush1.bf16.msra.mxu0 0
        %514 = vmatprep.subr.bf16.mxu0 0
        %515 = vmatpush1.bf16.msra.mxu0 0
        %516 = vmatprep.subr.bf16.mxu0 0
        %517 = vmatpush1.bf16.msra.mxu0 0
        %518 = vmatprep.subr.bf16.mxu0 0
        %519 = vmatpush1.bf16.msra.mxu0 0
        %520 = vmatprep.mubr.bf16.mxu0 0
        %521 = vmatmul.mubr.bf16.gmra.mrb[0].mxu0 %v400
        %v522 = vpop.f32.mrb[0].mxu0
        %v523 = vadd.f32 0.0, %v522
        %v524 = vpop.f32.mrb[0].mxu0
        %v525 = vpop.f32.mrb[0].mxu0
        %v526 = vadd.f32 0.0, %v525
        %v527 = vpop.f32.mrb[0].mxu0
        %528 = vmatprep.mubr.bf16.mxu0 0
        %529 = vmatmul.mubr.bf16.gmra.mrb[0].mxu0 %v401
        %v530 = vpop.f32.mrb[0].mxu0
        %v531 = vadd.f32 0.0, %v530
        %v532 = vpop.f32.mrb[0].mxu0
        %v533 = vpop.f32.mrb[0].mxu0
        %v534 = vadd.f32 0.0, %v533
        %v535 = vpop.f32.mrb[0].mxu0
        %536 = vmatprep.mubr.bf16.mxu0 0
        %537 = vmatmul.mubr.bf16.gmra.mrb[0].mxu0 %v402
        %v538 = vpop.f32.mrb[0].mxu0
        %v539 = vadd.f32 0.0, %v538
        %v540 = vpop.f32.mrb[0].mxu0
        %v541 = vpop.f32.mrb[0].mxu0
        %v542 = vadd.f32 0.0, %v541
        %v543 = vpop.f32.mrb[0].mxu0
        %544 = vmatprep.mubr.bf16.mxu0 0
        %545 = vmatmul.mubr.bf16.gmra.mrb[0].mxu0 %v403
        %v546 = vpop.f32.mrb[0].mxu0
        %v547 = vadd.f32 0.0, %v546
        %v548 = vpop.f32.mrb[0].mxu0
        %v549 = vpop.f32.mrb[0].mxu0
        %v550 = vadd.f32 0.0, %v549
        %v551 = vpop.f32.mrb[0].mxu0
        %552 = vmatprep.mubr.bf16.mxu0 0
        %553 = vmatmul.mubr.bf16.gmra.mrb[0].mxu0 %v404
        %v554 = vpop.f32.mrb[0].mxu0
        %v555 = vadd.f32 0.0, %v554
        %v556 = vpop.f32.mrb[0].mxu0
        %v557 = vpop.f32.mrb[0].mxu0
        %v558 = vadd.f32 0.0, %v557
        %v559 = vpop.f32.mrb[0].mxu0
        %560 = vmatprep.mubr.bf16.mxu0 0
        %561 = vmatmul.mubr.bf16.gmra.mrb[0].mxu0 %v405
        %v562 = vpop.f32.mrb[0].mxu0
        %v563 = vadd.f32 0.0, %v562
        %v564 = vpop.f32.mrb[0].mxu0
        %v565 = vpop.f32.mrb[0].mxu0
        %v566 = vadd.f32 0.0, %v565
        %v567 = vpop.f32.mrb[0].mxu0
        %568 = vmatprep.mubr.bf16.mxu0 0
        %569 = vmatmul.mubr.bf16.gmra.mrb[0].mxu0 %v406
        %v570 = vpop.f32.mrb[0].mxu0
        %v571 = vadd.f32 0.0, %v570
        %v572 = vpop.f32.mrb[0].mxu0
        %v573 = vpop.f32.mrb[0].mxu0
        %v574 = vadd.f32 0.0, %v573
        %v575 = vpop.f32.mrb[0].mxu0
        %576 = vmatprep.mubr.bf16.mxu0 0
        %577 = vmatmul.mubr.bf16.gmra.mrb[0].mxu0 %v407
        %v578 = vpop.f32.mrb[0].mxu0
        %v579 = vadd.f32 0.0, %v578
        %v580 = vpop.f32.mrb[0].mxu0
        %v581 = vpop.f32.mrb[0].mxu0
        %v582 = vadd.f32 0.0, %v581
        %v583 = vpop.f32.mrb[0].mxu0
        %584 = vdwg.mxu0
        %v585 = vadd.f32 %v408, %v523
        %v586 = vadd.f32 %v409, %v526
        %v587 = vadd.f32 %v410, %v531
        %v588 = vadd.f32 %v411, %v534
        %v589 = vadd.f32 %v412, %v539
        %v590 = vadd.f32 %v413, %v542
        %v591 = vadd.f32 %v414, %v547
        %v592 = vadd.f32 %v415, %v550
        %v593 = vadd.f32 %v416, %v555
        %v594 = vadd.f32 %v417, %v558
        %v595 = vadd.f32 %v418, %v563
        %v596 = vadd.f32 %v419, %v566
        %v597 = vadd.f32 %v420, %v571
        %v598 = vadd.f32 %v421, %v574
        %v599 = vadd.f32 %v422, %v579
        %v600 = vadd.f32 %v423, %v582
        %601 = vst [vmem:[#allocation2] sm:$0xff] %v585
        %602 = vst [vmem:[#allocation2 + $0x8] sm:$0xff] %v586
        %603 = vst [vmem:[#allocation2 + $0x10] sm:$0xff] %v587
        %604 = vst [vmem:[#allocation2 + $0x18] sm:$0xff] %v588
        %605 = vst [vmem:[#allocation2 + $0x20] sm:$0xff] %v589
        %606 = vst [vmem:[#allocation2 + $0x28] sm:$0xff] %v590
        %607 = vst [vmem:[#allocation2 + $0x30] sm:$0xff] %v591
        %608 = vst [vmem:[#allocation2 + $0x38] sm:$0xff] %v592
        %609 = vst [vmem:[#allocation2 + $0x40] sm:$0xff] %v593
        %610 = vst [vmem:[#allocation2 + $0x48] sm:$0xff] %v594
        %611 = vst [vmem:[#allocation2 + $0x50] sm:$0xff] %v595
        %612 = vst [vmem:[#allocation2 + $0x58] sm:$0xff] %v596
        %613 = vst [vmem:[#allocation2 + $0x60] sm:$0xff] %v597
        %614 = vst [vmem:[#allocation2 + $0x68] sm:$0xff] %v598
        %615 = vst [vmem:[#allocation2 + $0x70] sm:$0xff] %v599
        %616 = vst [vmem:[#allocation2 + $0x78] sm:$0xff] %v600
        %p617 = scmp.eq.s32.totalorder %s25, 1
        // Predicated region
        $region41: #{tpu_custom_call.1} parent=31 // pred_check
          %p618 = pneg %p617
        $region42: #{tpu_custom_call.1} parent=31 // pred_check_branch
          %620 = sbr.rel (%p618) target = $region44
        $region43: #{tpu_custom_call.1} parent=31 // pred_region
          %v621 = vld [vmem:[#allocation2] sm:$0xff]
          %v622 = vld [vmem:[#allocation2 + $0x8] sm:$0xff]
          %v623 = vld [vmem:[#allocation2 + $0x10] sm:$0xff]
          %v624 = vld [vmem:[#allocation2 + $0x18] sm:$0xff]
          %v625 = vld [vmem:[#allocation2 + $0x20] sm:$0xff]
          %v626 = vld [vmem:[#allocation2 + $0x28] sm:$0xff]
          %v627 = vld [vmem:[#allocation2 + $0x30] sm:$0xff]
          %v628 = vld [vmem:[#allocation2 + $0x38] sm:$0xff]
          %v629 = vld [vmem:[#allocation2 + $0x40] sm:$0xff]
          %v630 = vld [vmem:[#allocation2 + $0x48] sm:$0xff]
          %v631 = vld [vmem:[#allocation2 + $0x50] sm:$0xff]
          %v632 = vld [vmem:[#allocation2 + $0x58] sm:$0xff]
          %v633 = vld [vmem:[#allocation2 + $0x60] sm:$0xff]
          %v634 = vld [vmem:[#allocation2 + $0x68] sm:$0xff]
          %v635 = vld [vmem:[#allocation2 + $0x70] sm:$0xff]
          %v636 = vld [vmem:[#allocation2 + $0x78] sm:$0xff]
          %v637 = vpack.c.bf16 %v622, %v621
          %v638 = vpack.c.bf16 %v624, %v623
          %v639 = vpack.c.bf16 %v626, %v625
          %v640 = vpack.c.bf16 %v628, %v627
          %v641 = vpack.c.bf16 %v630, %v629
          %v642 = vpack.c.bf16 %v632, %v631
          %v643 = vpack.c.bf16 %v634, %v633
          %v644 = vpack.c.bf16 %v636, %v635
          %v653 = vunpack.c.l.b16 %v637
          %v654 = vunpack.c.h.b16 %v637
          %v655 = vunpack.c.l.b16 %v638
          %v656 = vunpack.c.h.b16 %v638
          %v657 = vunpack.c.l.b16 %v639
          %v658 = vunpack.c.h.b16 %v639
          %v659 = vunpack.c.l.b16 %v640
          %v660 = vunpack.c.h.b16 %v640
          %v661 = vunpack.c.l.b16 %v641
          %v662 = vunpack.c.h.b16 %v641
          %v663 = vunpack.c.l.b16 %v642
          %v664 = vunpack.c.h.b16 %v642
          %v665 = vunpack.c.l.b16 %v643
          %v666 = vunpack.c.h.b16 %v643
          %v667 = vunpack.c.l.b16 %v644
          %v668 = vunpack.c.h.b16 %v644
          %v669 = vpack.c.b16 %v653, %v653
          %v670 = vpack.c.b16 %v654, %v654
          %v671 = vpack.c.b16 %v655, %v655
          %v672 = vpack.c.b16 %v656, %v656
          %v673 = vpack.c.b16 %v657, %v657
          %v674 = vpack.c.b16 %v658, %v658
          %v675 = vpack.c.b16 %v659, %v659
          %v676 = vpack.c.b16 %v660, %v660
          %v677 = vpack.c.b16 %v661, %v661
          %v678 = vpack.c.b16 %v662, %v662
          %v679 = vpack.c.b16 %v663, %v663
          %v680 = vpack.c.b16 %v664, %v664
          %v681 = vpack.c.b16 %v665, %v665
          %v682 = vpack.c.b16 %v666, %v666
          %v683 = vpack.c.b16 %v667, %v667
          %v684 = vpack.c.b16 %v668, %v668
          %701 = vst [vmem:[%s236] sm:$0xf] %v669
          %702 = vst [vmem:[%s236 + $0x4] sm:$0xf] %v670
          %703 = vst [vmem:[%s236 + $0x8] sm:$0xf] %v671
          %704 = vst [vmem:[%s236 + $0xc] sm:$0xf] %v672
          %705 = vst [vmem:[%s236 + $0x10] sm:$0xf] %v673
          %706 = vst [vmem:[%s236 + $0x14] sm:$0xf] %v674
          %707 = vst [vmem:[%s236 + $0x18] sm:$0xf] %v675
          %708 = vst [vmem:[%s236 + $0x1c] sm:$0xf] %v676
          %709 = vst [vmem:[%s236 + $0x20] sm:$0xf] %v677
          %710 = vst [vmem:[%s236 + $0x24] sm:$0xf] %v678
          %711 = vst [vmem:[%s236 + $0x28] sm:$0xf] %v679
          %712 = vst [vmem:[%s236 + $0x2c] sm:$0xf] %v680
          %713 = vst [vmem:[%s236 + $0x30] sm:$0xf] %v681
          %714 = vst [vmem:[%s236 + $0x34] sm:$0xf] %v682
          %715 = vst [vmem:[%s236 + $0x38] sm:$0xf] %v683
          %716 = vst [vmem:[%s236 + $0x3c] sm:$0xf] %v684
        $region44: #{tpu_custom_call.1} parent=31 // pred_fallthru
          _
        %s717 = sand.u32 %s120, 1
        %s718 = scalar_lea.sflag [#allocation5], %s717
        %s719 = sand.u32 %s120, 1
        %s720 = smul.addr %s719, 64
        %s721 = scalar_lea.vmem [#allocation6], %s720
        // Predicated region
        $region45: #{tpu_custom_call.1} parent=31 // pred_check
          %p722 = pneg %p130
        $region46: #{tpu_custom_call.1} parent=31 // pred_check_branch
          %724 = sbr.rel (%p722) target = $region48
        $region47: #{tpu_custom_call.1} parent=31 // pred_region
          %s725 = smul.u32 16, %s24
          %s727 = ssub.s32 1024, 1024
          %728 = vsyncadd %s718, %s727
          %s729 = smul.addr %s725, 64
          %s730 = scalar_lea.hbm %s3, %s729
          %s731 = sshll.u32 %s721, 4
          %s732 = int_to_ptr.vmem [resolvable:$true] %s731
          %737 = dma.vmem_to_hbm [thread:$0]  %s732, 1024, %s730, %s718, 64, 64, 4
        $region48: #{tpu_custom_call.1} parent=31 // pred_fallthru
          _
      $region32: #{tpu_custom_call.1} parent=5 // pred_fallthru
        _
      %p738 = scmp.le.s32.totalorder 2, %s15
      // Predicated region
      $region49: #{tpu_custom_call.1} parent=5 // pred_check
        %p739 = pneg %p738
      $region50: #{tpu_custom_call.1} parent=5 // pred_check_branch
        %741 = sbr.rel (%p739) target = $region52
      $region51: #{tpu_custom_call.1} parent=5 // pred_region
        %s742 = ssub.s32 %s15, 2
        // Predicated region
        $region53: #{tpu_custom_call.1} parent=51 // pred_check
          %p743 = pneg %p136
        $region54: #{tpu_custom_call.1} parent=51 // pred_check_branch
          %745 = sbr.rel (%p743) target = $region56
        $region55: #{tpu_custom_call.1} parent=51 // pred_region
          %s746 = sand.u32 %s121, 1
          %s747 = scalar_lea.sflag [#allocation5], %s746
          %s748 = sand.u32 %s121, 1
          %s749 = smul.addr %s748, 64
          %s750 = scalar_lea.vmem [#allocation6], %s749
          %751 = dma.done %s747, 1024
        $region56: #{tpu_custom_call.1} parent=51 // pred_fallthru
          _
      $region52: #{tpu_custom_call.1} parent=5 // pred_fallthru
        _
    $region6: #{tpu_custom_call.1} parent=1 // loop_footer
      %s19 = sadd.s32 1, %s15
    $region7: #{tpu_custom_call.1} parent=1 // loop_footer_branch
      %14 = sbr.rel target = $region3
    $region8: #{tpu_custom_call.1} parent=1 // loop_exit
      _
    %752 = vsyncpa [#allocation4], 1
    %s753 = scalar_lea.sflag [#allocation4], 1
    %754 = vsyncpa %s753, 1
    %755 = vsyncpa [#allocation5], 1
    %s756 = scalar_lea.sflag [#allocation5], 1
    %757 = vsyncpa %s756, 1

</llo_original>
